<compile_context>
chip_gen: v7x
topology: tpu7x:2x2x1
jax: 0.10.0
libtpu: 0.0.40
codegen_flags: <defaults>
</compile_context>

<pallas_src>
import functools

import jax
import jax.numpy as jnp
from jax.experimental import pallas as pl
from jax.experimental.pallas import tpu as pltpu

BN_EPS = 1e-5


def _round_up(x, m):
    return (x + m - 1) // m * m


def _msan_pool_embed_kernel(x_ref, wconv_ref, avg_ref, max_ref, emb_ref, *, inv_s):
    """One channel tile: pooling reductions + partial 1x1-conv accumulation."""
    c = pl.program_id(1)

    @pl.when(c == 0)
    def _():
        # emb output block index depends only on the parallel axis, so this
        # (1, B, E) slab stays VMEM-resident across the channel axis (P3).
        emb_ref[...] = jnp.zeros_like(emb_ref)

    # x tile: (B, tC, S).  One DMA feeds both pooling reductions and the
    # partial contraction.
    x = x_ref[...].astype(jnp.float32)
    s_sum = jnp.sum(x, axis=-1)                 # (B, tC)  lane reduction
    s_max = jnp.max(x, axis=-1)                 # (B, tC)  lane reduction
    avg = s_sum * inv_s                         # AdaptiveAvgPool2d(1)
    g = avg + s_max                             # global_feat tile (sum of pools)

    avg_ref[...] = avg.astype(avg_ref.dtype)
    max_ref[...] = s_max.astype(max_ref.dtype)

    # 1x1 conv (bias=False): partial contraction over this channel tile,
    # accumulated in f32 directly in the resident output slab.
    emb_ref[...] += jnp.dot(
        g, wconv_ref[...].astype(jnp.float32),
        preferred_element_type=jnp.float32)[None, :, :]


def _vmem_budget():
    """Generation-aware VMEM budget (bytes): (vmem_limit, per_x_buffer)."""
    try:
        cap = int(pltpu.get_tpu_info().vmem_capacity_bytes)
    except Exception:
        cap = 64 * 1024 * 1024          # conservative fallback: v7x per-TC VMEM
    vmem_limit = (cap * 3) // 4         # 96 MiB on v5e/v6e, 48 MiB on v7x
    reserve = 8 * 1024 * 1024           # weight tiles, pooled outputs, emb slab
    per_x_buffer = max((vmem_limit - reserve) // 2, 2 * 1024 * 1024)
    return vmem_limit, per_x_buffer


def _pick_c_block(C, B, S, itemsize, per_buffer_budget):
    """Largest lane-legal channel tile whose *padded* x block fits the budget.

    Padded VMEM footprint of one (B, tC, S) buffer:
        B * round_up(tC, 8) * round_up(S, 128) * itemsize
    (the budget already accounts for the 2x double buffering).
    Only tC == C or tC a multiple of 128 dividing C are legal, because tC is
    the lane dim of the pooled (B, tC) output blocks.
    """
    s_pad = _round_up(S, 128)

    def fits(tc):
        return B * _round_up(tc, 8) * s_pad * itemsize <= per_buffer_budget

    if fits(C):
        return C
    candidates = [tc for tc in range(128, C, 128) if C % tc == 0]
    fitting = [tc for tc in candidates if fits(tc)]
    if fitting:
        return max(fitting)
    if candidates:
        # TODO(synk): even the smallest 128-multiple divisor of C exceeds the
        # per-buffer VMEM budget; may spill (raise vmem_limit upstream).
        return min(candidates)
    return C


def msan_embedding_head(x_nchw, w_conv, bn_gamma, w_cls, *, c_block=None):
    """x_nchw: (B, C, H, W); w_conv: (E, C, 1, 1); bn_gamma: (E,); w_cls: (NC, E).

    x_nchw may be f32 or bf16 (bf16 halves the HBM-read bound); accumulation
    is f32 either way.
    """
    B, C, H, W = x_nchw.shape
    E = w_conv.shape[0]
    S = H * W

    # Layout plumbing: NO transpose of the large activation tensor.
    x = x_nchw.reshape(B, C, S)                            # native (B, C, S)
    wconv_t = jnp.transpose(w_conv.reshape(E, C))          # (C, E)   (tiny)

    vmem_limit, per_x_buffer = _vmem_budget()
    itemsize = jnp.dtype(x.dtype).itemsize
    tC = _pick_c_block(C, B, S, itemsize, per_x_buffer) if c_block is None else c_block
    assert C % tC == 0, "channel block must divide C"
    assert tC == C or tC % 128 == 0, "channel block must be lane-legal"

    # Split channel blocks into parallel groups: on v7x (2 TCs) the leading
    # "parallel" axis shards across cores; on v5e/v6e it is just an outer loop.
    ncb_total = C // tC
    n_par = 2 if ncb_total % 2 == 0 and ncb_total >= 2 else 1
    ncb_per = ncb_total // n_par
    grid = (n_par, ncb_per)

    kernel = functools.partial(_msan_pool_embed_kernel, inv_s=1.0 / S)

    avg_p, max_p, emb_par = pl.pallas_call(
        kernel,
        grid=grid,
        in_specs=[
            pl.BlockSpec((B, tC, S), lambda p, c: (0, p * ncb_per + c, 0)),  # x tile
            pl.BlockSpec((tC, E), lambda p, c: (p * ncb_per + c, 0)),        # conv W tile
        ],
        out_specs=(
            pl.BlockSpec((B, tC), lambda p, c: (0, p * ncb_per + c)),        # avg pool
            pl.BlockSpec((B, tC), lambda p, c: (0, p * ncb_per + c)),        # max pool
            pl.BlockSpec((1, B, E), lambda p, c: (p, 0, 0)),                 # partial emb
        ),
        out_shape=(
            jax.ShapeDtypeStruct((B, C), jnp.float32),
            jax.ShapeDtypeStruct((B, C), jnp.float32),
            jax.ShapeDtypeStruct((n_par, B, E), jnp.float32),
        ),
        compiler_params=pltpu.CompilerParams(
            dimension_semantics=("parallel", "arbitrary"),
            vmem_limit_bytes=vmem_limit,
        ),
    )(x, wconv_t)

    # --- Tiny epilogue in plain XLA (keeps VMEM free, no cross-core reduce) ---
    emb = jnp.sum(emb_par, axis=0)                                  # (B, E)
    # BatchNorm2d, training mode: biased batch variance, bias frozen at 0.
    mean = jnp.mean(emb, axis=0, keepdims=True)
    var = jnp.mean((emb - mean) ** 2, axis=0, keepdims=True)
    bn = (emb - mean) * jax.lax.rsqrt(var + BN_EPS) * bn_gamma[None, :]
    # Linear classifier (bias=False).  'linear' branch: cls_outputs ==
    # pred_class_logits, so only one tensor is produced.
    logits = jnp.dot(bn, jnp.transpose(w_cls),
                     preferred_element_type=jnp.float32)
    feat = avg_p + max_p                                            # neck_feat 'before'

    return {
        "cls_outputs": logits,
        "pred_class_logits": logits,          # 'linear' branch: same tensor
        "pool_feats": [avg_p.reshape(B, C, 1, 1), max_p.reshape(B, C, 1, 1)],
        "features": feat,
    }


def reference(x_nchw, w_conv, bn_gamma, w_cls):
    B, C, H, W = x_nchw.shape
    E = w_conv.shape[0]
    xf = x_nchw.astype(jnp.float32)
    avg = jnp.mean(xf, axis=(2, 3))
    mx = jnp.max(xf, axis=(2, 3))
    g = avg + mx
    emb = g @ jnp.transpose(w_conv.reshape(E, C))
    mean = jnp.mean(emb, axis=0, keepdims=True)
    var = jnp.mean((emb - mean) ** 2, axis=0, keepdims=True)
    bn = (emb - mean) / jnp.sqrt(var + BN_EPS) * bn_gamma[None, :]
    logits = bn @ jnp.transpose(w_cls)
    return {
        "cls_outputs": logits,
        "pred_class_logits": logits,
        "pool_feats": [avg.reshape(B, C, 1, 1), mx.reshape(B, C, 1, 1)],
        "features": g,
    }


def _check(out, ref, atol=1e-4, rtol=1e-4):
    assert jnp.allclose(out["cls_outputs"], ref["cls_outputs"], atol=atol, rtol=rtol)
    assert jnp.allclose(out["pred_class_logits"], ref["pred_class_logits"], atol=atol, rtol=rtol)
    assert jnp.allclose(out["features"], ref["features"], atol=atol, rtol=rtol)
    assert jnp.allclose(out["pool_feats"][0], ref["pool_feats"][0], atol=atol, rtol=rtol)
    assert jnp.allclose(out["pool_feats"][1], ref["pool_feats"][1], atol=atol, rtol=rtol)


def _make_inputs(key, B, C, H, W, E, NC):
    kx, kc, kg, kw = jax.random.split(key, 4)
    x = jax.random.normal(kx, (B, C, H, W), dtype=jnp.float32)
    # Conv2d kaiming-style init (fan_out mode), deterministic.
    w_conv = jax.random.normal(kc, (E, C, 1, 1), dtype=jnp.float32) * (2.0 / E) ** 0.5
    # BN gamma ~ N(1, 0.02) (weights_init_kaiming), beta frozen at 0.
    bn_gamma = 1.0 + 0.02 * jax.random.normal(kg, (E,), dtype=jnp.float32)
    # Classifier weight ~ N(0, 0.001) (weights_init_classifier).
    w_cls = 0.001 * jax.random.normal(kw, (NC, E), dtype=jnp.float32)
    return x, w_conv, bn_gamma, w_cls


if __name__ == "__main__":
    key = jax.random.PRNGKey(0)
    k1, k2 = jax.random.split(key)

    # Test 1: small toy shapes, single channel tile (grid = (1, 1)).
    x, w_conv, bn_gamma, w_cls = _make_inputs(k1, B=4, C=32, H=8, W=8, E=16, NC=32)
    out = msan_embedding_head(x, w_conv, bn_gamma, w_cls)
    jax.block_until_ready(out)
    _check(out, reference(x, w_conv, bn_gamma, w_cls))

    # Test 2: exercise the parallel split + accumulating path
    # (C=512, tC=128 -> grid (2, 2): 2 parallel groups x 2 channel blocks).
    x, w_conv, bn_gamma, w_cls = _make_inputs(k2, B=4, C=512, H=8, W=8, E=64, NC=128)
    out = msan_embedding_head(x, w_conv, bn_gamma, w_cls, c_block=128)
    jax.block_until_ready(out)
    _check(out, reference(x, w_conv, bn_gamma, w_cls))

    # Test 3: bf16 activations (halves the HBM read that bounds this kernel).
    xb = x.astype(jnp.bfloat16)
    out_b = msan_embedding_head(xb, w_conv, bn_gamma, w_cls, c_block=128)
    jax.block_until_ready(out_b)
    _check(out_b, reference(xb, w_conv, bn_gamma, w_cls), atol=2e-2, rtol=2e-2)

    print("KERNEL_OK")
</pallas_src>

<mosaic_0001>
module attributes {stable_mosaic.version = 11 : i64} {
  func.func @_msan_pool_embed_kernel(%arg0: i32, %arg1: i32, %arg2: memref<4x32x64xf32, #tpu.memory_space<vmem>>, %arg3: memref<32x16xf32, #tpu.memory_space<vmem>>, %arg4: memref<4x32xf32, #tpu.memory_space<vmem>>, %arg5: memref<4x32xf32, #tpu.memory_space<vmem>>, %arg6: memref<1x4x16xf32, #tpu.memory_space<vmem>>) attributes {dimension_semantics = [#tpu.dimension_semantics<parallel>, #tpu.dimension_semantics<arbitrary>], iteration_bounds = array<i64: 1, 1>, scalar_prefetch = 0 : i64, scratch_operands = 0 : i64, tpu.core_type = #tpu.core_type<tc>, window_params = [{transform_indices = @transform_0, window_bounds = array<i64: 4, 32, 64>}, {transform_indices = @transform_1, window_bounds = array<i64: 32, 16>}, {transform_indices = @transform_2, window_bounds = array<i64: 4, 32>}, {transform_indices = @transform_3, window_bounds = array<i64: 4, 32>}, {transform_indices = @transform_4, window_bounds = array<i64: 1, 4, 16>}]} {
    %c0_i32 = arith.constant 0 : i32
    %0 = arith.cmpi eq, %arg1, %c0_i32 : i32
    %1 = arith.extui %0 : i1 to i32
    %c0_i32_0 = arith.constant 0 : i32
    %2 = arith.cmpi ne, %1, %c0_i32_0 : i32
    scf.if %2 {
      %cst_18 = arith.constant 0.000000e+00 : f32
      %17 = vector.broadcast %cst_18 : f32 to vector<1x4x16xf32>
      %c0_19 = arith.constant 0 : index
      %c0_20 = arith.constant 0 : index
      %c0_21 = arith.constant 0 : index
      %18 = vector.load %arg6[%c0_19, %c0_20, %c0_21] : memref<1x4x16xf32, #tpu.memory_space<vmem>>, vector<1x4x16xf32>
      tpu.vector_store %arg6[%c0_19, %c0_20, %c0_21], %17 {strides = array<i32>} : memref<1x4x16xf32, #tpu.memory_space<vmem>>, vector<1x4x16xf32>,
    } else {
    }
    %c0 = arith.constant 0 : index
    %c0_1 = arith.constant 0 : index
    %c0_2 = arith.constant 0 : index
    %3 = vector.load %arg2[%c0, %c0_1, %c0_2] : memref<4x32x64xf32, #tpu.memory_space<vmem>>, vector<4x32x64xf32>
    %cst = arith.constant dense<0.000000e+00> : vector<4x32xf32>
    %4 = vector.multi_reduction <add>, %3, %cst [2] : vector<4x32x64xf32> to vector<4x32xf32>
    %cst_3 = arith.constant dense<0xFF800000> : vector<4x32xf32>
    %5 = vector.multi_reduction <maximumf>, %3, %cst_3 [2] : vector<4x32x64xf32> to vector<4x32xf32>
    %cst_4 = arith.constant 1.562500e-02 : f32
    %6 = vector.broadcast %cst_4 : f32 to vector<4x32xf32>
    %7 = arith.mulf %4, %6 : vector<4x32xf32>
    %8 = arith.addf %7, %5 : vector<4x32xf32>
    %c0_5 = arith.constant 0 : index
    %c0_6 = arith.constant 0 : index
    %9 = vector.load %arg4[%c0_5, %c0_6] : memref<4x32xf32, #tpu.memory_space<vmem>>, vector<4x32xf32>
    tpu.vector_store %arg4[%c0_5, %c0_6], %7 {strides = array<i32>} : memref<4x32xf32, #tpu.memory_space<vmem>>, vector<4x32xf32>,
    %c0_7 = arith.constant 0 : index
    %c0_8 = arith.constant 0 : index
    %10 = vector.load %arg5[%c0_7, %c0_8] : memref<4x32xf32, #tpu.memory_space<vmem>>, vector<4x32xf32>
    tpu.vector_store %arg5[%c0_7, %c0_8], %5 {strides = array<i32>} : memref<4x32xf32, #tpu.memory_space<vmem>>, vector<4x32xf32>,
    %c0_9 = arith.constant 0 : index
    %c0_10 = arith.constant 0 : index
    %c0_11 = arith.constant 0 : index
    %11 = vector.load %arg6[%c0_9, %c0_10, %c0_11] : memref<1x4x16xf32, #tpu.memory_space<vmem>>, vector<1x4x16xf32>
    %c0_12 = arith.constant 0 : index
    %c0_13 = arith.constant 0 : index
    %12 = vector.load %arg3[%c0_12, %c0_13] : memref<32x16xf32, #tpu.memory_space<vmem>>, vector<32x16xf32>
    %cst_14 = arith.constant dense<0.000000e+00> : vector<4x16xf32>
    %13 = tpu.matmul %8, %12, %cst_14 {dimension_numbers = #tpu.dot_dimension_numbers<[1], [0], [0], [1], [0, 0, 1, 1], [], []>} : vector<4x32xf32>, vector<32x16xf32>, vector<4x16xf32> -> vector<4x16xf32>
    %14 = vector.shape_cast %13 : vector<4x16xf32> to vector<1x4x16xf32>
    %15 = arith.addf %11, %14 : vector<1x4x16xf32>
    %c0_15 = arith.constant 0 : index
    %c0_16 = arith.constant 0 : index
    %c0_17 = arith.constant 0 : index
    %16 = vector.load %arg6[%c0_15, %c0_16, %c0_17] : memref<1x4x16xf32, #tpu.memory_space<vmem>>, vector<1x4x16xf32>
    tpu.vector_store %arg6[%c0_15, %c0_16, %c0_17], %15 {strides = array<i32>} : memref<1x4x16xf32, #tpu.memory_space<vmem>>, vector<1x4x16xf32>,
    return
  }
  func.func @transform_0(%arg0: i32, %arg1: i32) -> (i32, i32, i32) {
    %c1_i32 = arith.constant 1 : i32
    %0 = arith.muli %arg0, %c1_i32 : i32
    %1 = arith.addi %0, %arg1 : i32
    %c0_i32 = arith.constant 0 : i32
    %c0_i32_0 = arith.constant 0 : i32
    %c0_i32_1 = arith.constant 0 : i32
    return %c0_i32, %1, %c0_i32_0 : i32, i32, i32
  }
  func.func @transform_1(%arg0: i32, %arg1: i32) -> (i32, i32) {
    %c1_i32 = arith.constant 1 : i32
    %0 = arith.muli %arg0, %c1_i32 : i32
    %1 = arith.addi %0, %arg1 : i32
    %c0_i32 = arith.constant 0 : i32
    %c0_i32_0 = arith.constant 0 : i32
    return %1, %c0_i32 : i32, i32
  }
  func.func @transform_2(%arg0: i32, %arg1: i32) -> (i32, i32) {
    %c1_i32 = arith.constant 1 : i32
    %0 = arith.muli %arg0, %c1_i32 : i32
    %1 = arith.addi %0, %arg1 : i32
    %c0_i32 = arith.constant 0 : i32
    %c0_i32_0 = arith.constant 0 : i32
    return %c0_i32, %1 : i32, i32
  }
  func.func @transform_3(%arg0: i32, %arg1: i32) -> (i32, i32) {
    %c1_i32 = arith.constant 1 : i32
    %0 = arith.muli %arg0, %c1_i32 : i32
    %1 = arith.addi %0, %arg1 : i32
    %c0_i32 = arith.constant 0 : i32
    %c0_i32_0 = arith.constant 0 : i32
    return %c0_i32, %1 : i32, i32
  }
  func.func @transform_4(%arg0: i32, %arg1: i32) -> (i32, i32, i32) {
    %c0_i32 = arith.constant 0 : i32
    %c0_i32_0 = arith.constant 0 : i32
    %c0_i32_1 = arith.constant 0 : i32
    return %arg0, %c0_i32, %c0_i32_0 : i32, i32, i32
  }
}

</mosaic_0001>

<llo_original>
// kernel: tpu_custom_call.1
$region0: #{tpu_custom_call.1}
  #allocation0 [shape = 'u32[]', space=smem, size = 0x4, offset = 0x4, fixed_abs, tag = 'smem constant byte address 0x4 - core index']
  #allocation1 [shape = 'u32[144,128]{1,0:T(1,128)}', space=vmem, size = 0x12000, scoped, tag = 'internal scratch']
  %s0 = inlined_call_operand.hbm [shape: f32[4,32,64], index: 0, kind: input, shape index: {}]
  %s1 = inlined_call_operand.vmem [shape: f32[32,16], index: 1, kind: input, shape index: {}]
  %s2 = inlined_call_operand.hbm [shape: f32[4,32], index: 2, kind: output, shape index: {0}]
  %s3 = inlined_call_operand.hbm [shape: f32[4,32], index: 3, kind: output, shape index: {1}]
  %s4 = inlined_call_operand.hbm [shape: f32[1,4,16], index: 4, kind: output, shape index: {2}]
  %5 = xla_tuple %s2, %s3, %s4
  %s6 = sld [smem:[#allocation0]]
  $region42: #{tpu_custom_call.1} parent=0
    _
  %s8 = ssub.s32 1, %s6
  %s9 = scalar_select 0, %s8, %s6
  $region1: #{tpu_custom_call.1} parent=0
    #allocation2 [shape = 'u8[65536]{0}', space=vmem, size = 0x10000, scoped, tag = 'input window, operand 0, single buffered']
    #allocation3 [shape = 's32[1]{0}', space=sflag, size = 0x4, scoped, tag = 'scoped memory for tpu_custom_call.1']
    #allocation4 [shape = 's32[1]{0}', space=sflag, size = 0x4, scoped, tag = 'scoped memory for tpu_custom_call.1']
    #allocation5 [shape = 'u8[2048]{0}', space=vmem, size = 0x800, scoped, tag = 'output window, operand 0, single buffered']
    #allocation6 [shape = 'u8[2048]{0}', space=vmem, size = 0x800, scoped, tag = 'output window, operand 1, single buffered']
    #allocation7 [shape = 's32[1]{0}', space=sflag, size = 0x4, scoped, tag = 'scoped memory for tpu_custom_call.1']
    #allocation8 [shape = 'u8[2048]{0}', space=vmem, size = 0x800, scoped, tag = 'output window, operand 2, single buffered']
    %10 = vsyncpa [#allocation3], 0
    %11 = vsyncpa [#allocation4], 0
    %12 = vsyncpa [#allocation7], 0
    // Predicated region
    $region2: #{tpu_custom_call.1} parent=1 // pred_check
      _
    $region3: #{tpu_custom_call.1} parent=1 // pred_check_branch
      %14 = sbr.rel (0) target = $region5
    $region4: #{tpu_custom_call.1} parent=1 // pred_region
      %s15 = sadd.s32 0, 0
      %s16 = smul.u32 4, %s15
      %s18 = ssub.s32 2048, 2048
      %19 = vsyncadd [#allocation3], %s18
      %s20 = smul.addr %s16, 128
      %s21 = scalar_lea.hbm %s0, %s20
      %s22 = sshll.u32 [#allocation2], 4
      %s23 = int_to_ptr.vmem [resolvable:$true] %s22
      %28 = dma.hbm_to_vmem [thread:$0]  %s21, 2048, %s23, [#allocation3], 128, 128, 8
    $region5: #{tpu_custom_call.1} parent=1 // pred_fallthru
      _
    // Predicated region
    $region6: #{tpu_custom_call.1} parent=1 // pred_check
      _
    $region7: #{tpu_custom_call.1} parent=1 // pred_check_branch
      %30 = sbr.rel (0) target = $region9
    $region8: #{tpu_custom_call.1} parent=1 // pred_region
      %s31 = sadd.s32 0, 0
      %s32 = smul.u32 4, %s31
      %p33 = scmp.lt.s32.totalorder %s32, 3
      %s34 = scalar_select %p33, %s32, 3
      %s35 = smul.addr %s34, 8
      %s36 = scalar_lea.vmem %s1, %s35
      %s37 = sadd.s32 0, 0
      %s38 = smul.u32 4, %s37
    $region9: #{tpu_custom_call.1} parent=1 // pred_fallthru
      _
    // Predicated region
    $region10: #{tpu_custom_call.1} parent=1 // pred_check
      _
    $region11: #{tpu_custom_call.1} parent=1 // pred_check_branch
      %40 = sbr.rel (0) target = $region13
    $region12: #{tpu_custom_call.1} parent=1 // pred_region
      %41 = dma.done [#allocation3], 2048
    $region13: #{tpu_custom_call.1} parent=1 // pred_fallthru
      _
    %s42 = sadd.s32 0, 0
    %s43 = smul.u32 4, %s42
    %p44 = scmp.lt.s32.totalorder %s43, 3
    %s45 = scalar_select %p44, %s43, 3
    %s46 = smul.addr %s45, 8
    %s47 = scalar_lea.vmem %s1, %s46
    %s48 = sadd.s32 0, 0
    %s49 = smul.u32 4, %s48
    %s50 = sadd.s32 0, 0
    %s51 = smul.u32 4, %s50
    %p52 = scmp.lt.s32.totalorder %s51, 3
    %s53 = scalar_select %p52, %s51, 3
    %s54 = smul.addr %s53, 8
    %s55 = scalar_lea.vmem %s1, %s54
    %s56 = sadd.s32 0, 0
    %s57 = smul.u32 4, %s56
    %s58 = sadd.s32 0, 0
    %s59 = sadd.s32 0, 0
    %p60 = scmp.eq.s32.totalorder 0, 0
    // Predicated region
    $region14: #{tpu_custom_call.1} parent=1 // pred_check
      %p61 = pneg %p60
    $region15: #{tpu_custom_call.1} parent=1 // pred_check_branch
      %63 = sbr.rel (%p61) target = $region17
    $region16: #{tpu_custom_call.1} parent=1 // pred_region
      %vm64 = vcmask 125952
      %65 = vst.msk [vmem:[#allocation8] sm:$0xf] %vm64, 0.0
    $region17: #{tpu_custom_call.1} parent=1 // pred_fallthru
      _
    %v66 = vld [vmem:[#allocation2] sm:$0xff]
    %v67 = vld [vmem:[#allocation2 + $0x8] sm:$0xff]
    %v68 = vld [vmem:[#allocation2 + $0x10] sm:$0xff]
    %v69 = vld [vmem:[#allocation2 + $0x18] sm:$0xff]
    %v70 = vld [vmem:[#allocation2 + $0x20] sm:$0xff]
    %v71 = vld [vmem:[#allocation2 + $0x28] sm:$0xff]
    %v72 = vld [vmem:[#allocation2 + $0x30] sm:$0xff]
    %v73 = vld [vmem:[#allocation2 + $0x38] sm:$0xff]
    %v74 = vld [vmem:[#allocation2 + $0x40] sm:$0xff]
    %v75 = vld [vmem:[#allocation2 + $0x48] sm:$0xff]
    %v76 = vld [vmem:[#allocation2 + $0x50] sm:$0xff]
    %v77 = vld [vmem:[#allocation2 + $0x58] sm:$0xff]
    %v78 = vld [vmem:[#allocation2 + $0x60] sm:$0xff]
    %v79 = vld [vmem:[#allocation2 + $0x68] sm:$0xff]
    %v80 = vld [vmem:[#allocation2 + $0x70] sm:$0xff]
    %v81 = vld [vmem:[#allocation2 + $0x78] sm:$0xff]
    %vm82 = vcmask 523264
    %v83 = vsel %vm82, %v66, 0.0
    %84 = vadd.xlane.f32.xlu0 %v83
    %v85 = vpop.xlane.xlu0 %84
    %v86 = vsel %vm82, %v67, 0.0
    %87 = vadd.xlane.f32.xlu0 %v86
    %v88 = vpop.xlane.xlu0 %87
    %v89 = vsel %vm82, %v68, 0.0
    %90 = vadd.xlane.f32.xlu0 %v89
    %v91 = vpop.xlane.xlu0 %90
    %v92 = vsel %vm82, %v69, 0.0
    %93 = vadd.xlane.f32.xlu0 %v92
    %v94 = vpop.xlane.xlu0 %93
    %v95 = vsel %vm82, %v70, 0.0
    %96 = vadd.xlane.f32.xlu0 %v95
    %v97 = vpop.xlane.xlu0 %96
    %v98 = vsel %vm82, %v71, 0.0
    %99 = vadd.xlane.f32.xlu0 %v98
    %v100 = vpop.xlane.xlu0 %99
    %v101 = vsel %vm82, %v72, 0.0
    %102 = vadd.xlane.f32.xlu0 %v101
    %v103 = vpop.xlane.xlu0 %102
    %v104 = vsel %vm82, %v73, 0.0
    %105 = vadd.xlane.f32.xlu0 %v104
    %v106 = vpop.xlane.xlu0 %105
    %v107 = vsel %vm82, %v74, 0.0
    %108 = vadd.xlane.f32.xlu0 %v107
    %v109 = vpop.xlane.xlu0 %108
    %v110 = vsel %vm82, %v75, 0.0
    %111 = vadd.xlane.f32.xlu0 %v110
    %v112 = vpop.xlane.xlu0 %111
    %v113 = vsel %vm82, %v76, 0.0
    %114 = vadd.xlane.f32.xlu0 %v113
    %v115 = vpop.xlane.xlu0 %114
    %v116 = vsel %vm82, %v77, 0.0
    %117 = vadd.xlane.f32.xlu0 %v116
    %v118 = vpop.xlane.xlu0 %117
    %v119 = vsel %vm82, %v78, 0.0
    %120 = vadd.xlane.f32.xlu0 %v119
    %v121 = vpop.xlane.xlu0 %120
    %v122 = vsel %vm82, %v79, 0.0
    %123 = vadd.xlane.f32.xlu0 %v122
    %v124 = vpop.xlane.xlu0 %123
    %v125 = vsel %vm82, %v80, 0.0
    %126 = vadd.xlane.f32.xlu0 %v125
    %v127 = vpop.xlane.xlu0 %126
    %v128 = vsel %vm82, %v81, 0.0
    %129 = vadd.xlane.f32.xlu0 %v128
    %v130 = vpop.xlane.xlu0 %129
    %v131 = vsel %vm82, %v66, -inf
    %132 = vmax.xlane.f32.xlu0 %v131
    %v133 = vpop.xlane.xlu0 %132
    %v134 = vsel %vm82, %v67, -inf
    %135 = vmax.xlane.f32.xlu0 %v134
    %v136 = vpop.xlane.xlu0 %135
    %v137 = vsel %vm82, %v68, -inf
    %138 = vmax.xlane.f32.xlu0 %v137
    %v139 = vpop.xlane.xlu0 %138
    %v140 = vsel %vm82, %v69, -inf
    %141 = vmax.xlane.f32.xlu0 %v140
    %v142 = vpop.xlane.xlu0 %141
    %v143 = vsel %vm82, %v70, -inf
    %144 = vmax.xlane.f32.xlu0 %v143
    %v145 = vpop.xlane.xlu0 %144
    %v146 = vsel %vm82, %v71, -inf
    %147 = vmax.xlane.f32.xlu0 %v146
    %v148 = vpop.xlane.xlu0 %147
    %v149 = vsel %vm82, %v72, -inf
    %150 = vmax.xlane.f32.xlu0 %v149
    %v151 = vpop.xlane.xlu0 %150
    %v152 = vsel %vm82, %v73, -inf
    %153 = vmax.xlane.f32.xlu0 %v152
    %v154 = vpop.xlane.xlu0 %153
    %v155 = vsel %vm82, %v74, -inf
    %156 = vmax.xlane.f32.xlu0 %v155
    %v157 = vpop.xlane.xlu0 %156
    %v158 = vsel %vm82, %v75, -inf
    %159 = vmax.xlane.f32.xlu0 %v158
    %v160 = vpop.xlane.xlu0 %159
    %v161 = vsel %vm82, %v76, -inf
    %162 = vmax.xlane.f32.xlu0 %v161
    %v163 = vpop.xlane.xlu0 %162
    %v164 = vsel %vm82, %v77, -inf
    %165 = vmax.xlane.f32.xlu0 %v164
    %v166 = vpop.xlane.xlu0 %165
    %v167 = vsel %vm82, %v78, -inf
    %168 = vmax.xlane.f32.xlu0 %v167
    %v169 = vpop.xlane.xlu0 %168
    %v170 = vsel %vm82, %v79, -inf
    %171 = vmax.xlane.f32.xlu0 %v170
    %v172 = vpop.xlane.xlu0 %171
    %v173 = vsel %vm82, %v80, -inf
    %174 = vmax.xlane.f32.xlu0 %v173
    %v175 = vpop.xlane.xlu0 %174
    %v176 = vsel %vm82, %v81, -inf
    %177 = vmax.xlane.f32.xlu0 %v176
    %v178 = vpop.xlane.xlu0 %177
    %v179 = vmul.f32 %v85, 0.015625
    %v180 = vmul.f32 %v88, 0.015625
    %v181 = vmul.f32 %v91, 0.015625
    %v182 = vmul.f32 %v94, 0.015625
    %v183 = vmul.f32 %v97, 0.015625
    %v184 = vmul.f32 %v100, 0.015625
    %v185 = vmul.f32 %v103, 0.015625
    %v186 = vmul.f32 %v106, 0.015625
    %v187 = vmul.f32 %v109, 0.015625
    %v188 = vmul.f32 %v112, 0.015625
    %v189 = vmul.f32 %v115, 0.015625
    %v190 = vmul.f32 %v118, 0.015625
    %v191 = vmul.f32 %v121, 0.015625
    %v192 = vmul.f32 %v124, 0.015625
    %v193 = vmul.f32 %v127, 0.015625
    %v194 = vmul.f32 %v130, 0.015625
    %v195 = vadd.f32 %v179, %v133
    %v196 = vadd.f32 %v180, %v136
    %v197 = vadd.f32 %v181, %v139
    %v198 = vadd.f32 %v182, %v142
    %v199 = vadd.f32 %v183, %v145
    %v200 = vadd.f32 %v184, %v148
    %v201 = vadd.f32 %v185, %v151
    %v202 = vadd.f32 %v186, %v154
    %v203 = vadd.f32 %v187, %v157
    %v204 = vadd.f32 %v188, %v160
    %v205 = vadd.f32 %v189, %v163
    %v206 = vadd.f32 %v190, %v166
    %v207 = vadd.f32 %v191, %v169
    %v208 = vadd.f32 %v192, %v172
    %v209 = vadd.f32 %v193, %v175
    %v210 = vadd.f32 %v194, %v178
    %v227 = vlaneseq
    %v228 = vand.u32 %v227, 127
    %v229 = vlaneseq
    %v230 = vshrl.u32 %v229, 7
    %v231 = vsub.s32 %v228, %v230
    %v232 = vrot.slane %v179, %v231
    %v233 = vadd.s32 %v228, 4294967288
    %v234 = vlaneseq
    %v235 = vshrl.u32 %v234, 7
    %v236 = vsub.s32 %v233, %v235
    %v237 = vrot.slane %v180, %v236
    %vm238 = vcmask 130112
    %v239 = vsel %vm238, %v237, %v232
    %v240 = vadd.s32 %v228, 4294967280
    %v241 = vlaneseq
    %v242 = vshrl.u32 %v241, 7
    %v243 = vsub.s32 %v240, %v242
    %v244 = vrot.slane %v181, %v243
    %vm245 = vcmask 195712
    %v246 = vsel %vm245, %v244, %v239
    %v247 = vadd.s32 %v228, 4294967272
    %v248 = vlaneseq
    %v249 = vshrl.u32 %v248, 7
    %v250 = vsub.s32 %v247, %v249
    %v251 = vrot.slane %v182, %v250
    %vm252 = vcmask 261312
    %v253 = vsel %vm252, %v251, %v246
    %v254 = vlaneseq
    %v255 = vshrl.u32 %v254, 7
    %v256 = vsub.s32 %v228, %v255
    %v257 = vrot.slane %v183, %v256
    %v258 = vlaneseq
    %v259 = vshrl.u32 %v258, 7
    %v260 = vsub.s32 %v233, %v259
    %v261 = vrot.slane %v184, %v260
    %v262 = vsel %vm238, %v261, %v257
    %v263 = vlaneseq
    %v264 = vshrl.u32 %v263, 7
    %v265 = vsub.s32 %v240, %v264
    %v266 = vrot.slane %v185, %v265
    %v267 = vsel %vm245, %v266, %v262
    %v268 = vlaneseq
    %v269 = vshrl.u32 %v268, 7
    %v270 = vsub.s32 %v247, %v269
    %v271 = vrot.slane %v186, %v270
    %v272 = vsel %vm252, %v271, %v267
    %v273 = vlaneseq
    %v274 = vshrl.u32 %v273, 7
    %v275 = vsub.s32 %v228, %v274
    %v276 = vrot.slane %v187, %v275
    %v277 = vlaneseq
    %v278 = vshrl.u32 %v277, 7
    %v279 = vsub.s32 %v233, %v278
    %v280 = vrot.slane %v188, %v279
    %v281 = vsel %vm238, %v280, %v276
    %v282 = vlaneseq
    %v283 = vshrl.u32 %v282, 7
    %v284 = vsub.s32 %v240, %v283
    %v285 = vrot.slane %v189, %v284
    %v286 = vsel %vm245, %v285, %v281
    %v287 = vlaneseq
    %v288 = vshrl.u32 %v287, 7
    %v289 = vsub.s32 %v247, %v288
    %v290 = vrot.slane %v190, %v289
    %v291 = vsel %vm252, %v290, %v286
    %v292 = vlaneseq
    %v293 = vshrl.u32 %v292, 7
    %v294 = vsub.s32 %v228, %v293
    %v295 = vrot.slane %v191, %v294
    %v296 = vlaneseq
    %v297 = vshrl.u32 %v296, 7
    %v298 = vsub.s32 %v233, %v297
    %v299 = vrot.slane %v192, %v298
    %v300 = vsel %vm238, %v299, %v295
    %v301 = vlaneseq
    %v302 = vshrl.u32 %v301, 7
    %v303 = vsub.s32 %v240, %v302
    %v304 = vrot.slane %v193, %v303
    %v305 = vsel %vm245, %v304, %v300
    %v306 = vlaneseq
    %v307 = vshrl.u32 %v306, 7
    %v308 = vsub.s32 %v247, %v307
    %v309 = vrot.slane %v194, %v308
    %v310 = vsel %vm252, %v309, %v305
    %vm311 = vcmask 1041409
    %v312 = vsel %vm311, %v272, %v253
    %vm313 = vcmask 1042434
    %v314 = vsel %vm313, %v291, %v312
    %vm315 = vcmask 1043459
    %v316 = vsel %vm315, %v310, %v314
    %vm318 = vcmask 257024
    %319 = vst.msk [vmem:[#allocation5] sm:$0xf] %vm318, %v316
    %v336 = vlaneseq
    %v337 = vshrl.u32 %v336, 7
    %v338 = vsub.s32 %v228, %v337
    %v339 = vrot.slane %v133, %v338
    %v340 = vlaneseq
    %v341 = vshrl.u32 %v340, 7
    %v342 = vsub.s32 %v233, %v341
    %v343 = vrot.slane %v136, %v342
    %v344 = vsel %vm238, %v343, %v339
    %v345 = vlaneseq
    %v346 = vshrl.u32 %v345, 7
    %v347 = vsub.s32 %v240, %v346
    %v348 = vrot.slane %v139, %v347
    %v349 = vsel %vm245, %v348, %v344
    %v350 = vlaneseq
    %v351 = vshrl.u32 %v350, 7
    %v352 = vsub.s32 %v247, %v351
    %v353 = vrot.slane %v142, %v352
    %v354 = vsel %vm252, %v353, %v349
    %v355 = vlaneseq
    %v356 = vshrl.u32 %v355, 7
    %v357 = vsub.s32 %v228, %v356
    %v358 = vrot.slane %v145, %v357
    %v359 = vlaneseq
    %v360 = vshrl.u32 %v359, 7
    %v361 = vsub.s32 %v233, %v360
    %v362 = vrot.slane %v148, %v361
    %v363 = vsel %vm238, %v362, %v358
    %v364 = vlaneseq
    %v365 = vshrl.u32 %v364, 7
    %v366 = vsub.s32 %v240, %v365
    %v367 = vrot.slane %v151, %v366
    %v368 = vsel %vm245, %v367, %v363
    %v369 = vlaneseq
    %v370 = vshrl.u32 %v369, 7
    %v371 = vsub.s32 %v247, %v370
    %v372 = vrot.slane %v154, %v371
    %v373 = vsel %vm252, %v372, %v368
    %v374 = vlaneseq
    %v375 = vshrl.u32 %v374, 7
    %v376 = vsub.s32 %v228, %v375
    %v377 = vrot.slane %v157, %v376
    %v378 = vlaneseq
    %v379 = vshrl.u32 %v378, 7
    %v380 = vsub.s32 %v233, %v379
    %v381 = vrot.slane %v160, %v380
    %v382 = vsel %vm238, %v381, %v377
    %v383 = vlaneseq
    %v384 = vshrl.u32 %v383, 7
    %v385 = vsub.s32 %v240, %v384
    %v386 = vrot.slane %v163, %v385
    %v387 = vsel %vm245, %v386, %v382
    %v388 = vlaneseq
    %v389 = vshrl.u32 %v388, 7
    %v390 = vsub.s32 %v247, %v389
    %v391 = vrot.slane %v166, %v390
    %v392 = vsel %vm252, %v391, %v387
    %v393 = vlaneseq
    %v394 = vshrl.u32 %v393, 7
    %v395 = vsub.s32 %v228, %v394
    %v396 = vrot.slane %v169, %v395
    %v397 = vlaneseq
    %v398 = vshrl.u32 %v397, 7
    %v399 = vsub.s32 %v233, %v398
    %v400 = vrot.slane %v172, %v399
    %v401 = vsel %vm238, %v400, %v396
    %v402 = vlaneseq
    %v403 = vshrl.u32 %v402, 7
    %v404 = vsub.s32 %v240, %v403
    %v405 = vrot.slane %v175, %v404
    %v406 = vsel %vm245, %v405, %v401
    %v407 = vlaneseq
    %v408 = vshrl.u32 %v407, 7
    %v409 = vsub.s32 %v247, %v408
    %v410 = vrot.slane %v178, %v409
    %v411 = vsel %vm252, %v410, %v406
    %v412 = vsel %vm311, %v373, %v354
    %v413 = vsel %vm313, %v392, %v412
    %v414 = vsel %vm315, %v411, %v413
    %416 = vst.msk [vmem:[#allocation6] sm:$0xf] %vm318, %v414
    %v417 = vld [vmem:[#allocation8] sm:$0xf]
    %v418 = vld [vmem:[%s55] sm:$0xff]
    %v419 = vld [vmem:[%s55 + $0x8] sm:$0xff]
    %v420 = vld [vmem:[%s55 + $0x10] sm:$0xff]
    %v421 = vld [vmem:[%s55 + $0x18] sm:$0xff]
    %v438 = vlaneseq
    %v439 = vshrl.u32 %v438, 7
    %v440 = vsub.s32 %v228, %v439
    %v441 = vrot.slane %v195, %v440
    %v442 = vlaneseq
    %v443 = vshrl.u32 %v442, 7
    %v444 = vsub.s32 %v233, %v443
    %v445 = vrot.slane %v196, %v444
    %v446 = vsel %vm238, %v445, %v441
    %v447 = vlaneseq
    %v448 = vshrl.u32 %v447, 7
    %v449 = vsub.s32 %v240, %v448
    %v450 = vrot.slane %v197, %v449
    %v451 = vsel %vm245, %v450, %v446
    %v452 = vlaneseq
    %v453 = vshrl.u32 %v452, 7
    %v454 = vsub.s32 %v247, %v453
    %v455 = vrot.slane %v198, %v454
    %v456 = vsel %vm252, %v455, %v451
    %v457 = vlaneseq
    %v458 = vshrl.u32 %v457, 7
    %v459 = vsub.s32 %v228, %v458
    %v460 = vrot.slane %v199, %v459
    %v461 = vlaneseq
    %v462 = vshrl.u32 %v461, 7
    %v463 = vsub.s32 %v233, %v462
    %v464 = vrot.slane %v200, %v463
    %v465 = vsel %vm238, %v464, %v460
    %v466 = vlaneseq
    %v467 = vshrl.u32 %v466, 7
    %v468 = vsub.s32 %v240, %v467
    %v469 = vrot.slane %v201, %v468
    %v470 = vsel %vm245, %v469, %v465
    %v471 = vlaneseq
    %v472 = vshrl.u32 %v471, 7
    %v473 = vsub.s32 %v247, %v472
    %v474 = vrot.slane %v202, %v473
    %v475 = vsel %vm252, %v474, %v470
    %v476 = vlaneseq
    %v477 = vshrl.u32 %v476, 7
    %v478 = vsub.s32 %v228, %v477
    %v479 = vrot.slane %v203, %v478
    %v480 = vlaneseq
    %v481 = vshrl.u32 %v480, 7
    %v482 = vsub.s32 %v233, %v481
    %v483 = vrot.slane %v204, %v482
    %v484 = vsel %vm238, %v483, %v479
    %v485 = vlaneseq
    %v486 = vshrl.u32 %v485, 7
    %v487 = vsub.s32 %v240, %v486
    %v488 = vrot.slane %v205, %v487
    %v489 = vsel %vm245, %v488, %v484
    %v490 = vlaneseq
    %v491 = vshrl.u32 %v490, 7
    %v492 = vsub.s32 %v247, %v491
    %v493 = vrot.slane %v206, %v492
    %v494 = vsel %vm252, %v493, %v489
    %v495 = vlaneseq
    %v496 = vshrl.u32 %v495, 7
    %v497 = vsub.s32 %v228, %v496
    %v498 = vrot.slane %v207, %v497
    %v499 = vlaneseq
    %v500 = vshrl.u32 %v499, 7
    %v501 = vsub.s32 %v233, %v500
    %v502 = vrot.slane %v208, %v501
    %v503 = vsel %vm238, %v502, %v498
    %v504 = vlaneseq
    %v505 = vshrl.u32 %v504, 7
    %v506 = vsub.s32 %v240, %v505
    %v507 = vrot.slane %v209, %v506
    %v508 = vsel %vm245, %v507, %v503
    %v509 = vlaneseq
    %v510 = vshrl.u32 %v509, 7
    %v511 = vsub.s32 %v247, %v510
    %v512 = vrot.slane %v210, %v511
    %v513 = vsel %vm252, %v512, %v508
    %v514 = vsel %vm311, %v475, %v456
    %v515 = vsel %vm313, %v494, %v514
    %v516 = vsel %vm315, %v513, %v515
    %vm517 = vcmask 261120
    %v518 = vsel %vm517, %v516, 0
    %520 = vmatprep.subr.mxu0 0.0
    %521 = vmatpush1.msra.mxu0 %v418
    %522 = vmatprep.subr.mxu0 0.0
    %523 = vmatpush1.msra.mxu0 %v419
    %524 = vmatprep.subr.mxu0 0.0
    %525 = vmatpush1.msra.mxu0 %v420
    %526 = vmatprep.subr.mxu0 0.0
    %527 = vmatpush1.msra.mxu0 %v421
    %528 = vmatprep.subr.mxu0 0.0
    %529 = vmatpush1.msra.mxu0 0.0
    %530 = vmatprep.subr.mxu0 0.0
    %531 = vmatpush1.msra.mxu0 0.0
    %532 = vmatprep.subr.mxu0 0.0
    %533 = vmatpush1.msra.mxu0 0.0
    %534 = vmatprep.subr.mxu0 0.0
    %535 = vmatpush1.msra.mxu0 0.0
    %536 = vmatprep.subr.mxu0 0.0
    %537 = vmatpush1.msra.mxu0 0.0
    %538 = vmatprep.subr.mxu0 0.0
    %539 = vmatpush1.msra.mxu0 0.0
    %540 = vmatprep.subr.mxu0 0.0
    %541 = vmatpush1.msra.mxu0 0.0
    %542 = vmatprep.subr.mxu0 0.0
    %543 = vmatpush1.msra.mxu0 0.0
    %544 = vmatprep.subr.mxu0 0.0
    %545 = vmatpush1.msra.mxu0 0.0
    %546 = vmatprep.subr.mxu0 0.0
    %547 = vmatpush1.msra.mxu0 0.0
    %548 = vmatprep.subr.mxu0 0.0
    %549 = vmatpush1.msra.mxu0 0.0
    %550 = vmatprep.subr.mxu0 0.0
    %551 = vmatpush1.msra.mxu0 0.0
    %552 = vmatprep.subr.mxu0 0.0
    %553 = vmatpush1.msra.mxu0 0.0
    %554 = vmatprep.subr.mxu0 0.0
    %555 = vmatpush1.msra.mxu0 0.0
    %556 = vmatprep.subr.mxu0 0.0
    %557 = vmatpush1.msra.mxu0 0.0
    %558 = vmatprep.subr.mxu0 0.0
    %559 = vmatpush1.msra.mxu0 0.0
    %560 = vmatprep.subr.mxu0 0.0
    %561 = vmatpush1.msra.mxu0 0.0
    %562 = vmatprep.subr.mxu0 0.0
    %563 = vmatpush1.msra.mxu0 0.0
    %564 = vmatprep.subr.mxu0 0.0
    %565 = vmatpush1.msra.mxu0 0.0
    %566 = vmatprep.subr.mxu0 0.0
    %567 = vmatpush1.msra.mxu0 0.0
    %568 = vmatprep.subr.mxu0 0.0
    %569 = vmatpush1.msra.mxu0 0.0
    %570 = vmatprep.subr.mxu0 0.0
    %571 = vmatpush1.msra.mxu0 0.0
    %572 = vmatprep.subr.mxu0 0.0
    %573 = vmatpush1.msra.mxu0 0.0
    %574 = vmatprep.subr.mxu0 0.0
    %575 = vmatpush1.msra.mxu0 0.0
    %576 = vmatprep.subr.mxu0 0.0
    %577 = vmatpush1.msra.mxu0 0.0
    %578 = vmatprep.subr.mxu0 0.0
    %579 = vmatpush1.msra.mxu0 0.0
    %580 = vmatprep.subr.mxu0 0.0
    %581 = vmatpush1.msra.mxu0 0.0
    %582 = vmatprep.subr.mxu0 0.0
    %583 = vmatpush1.msra.mxu0 0.0
    %584 = vmatprep.mubr.f32.mxu0 0.0
    %585 = vmatmul.mubr.f32.gmra.mrb[0].mxu0 %v518
    %v586 = vpop.f32.mrb[0].mxu0
    %v587 = vadd.f32 0.0, %v586
    %v588 = vpop.f32.mrb[0].mxu0
    %589 = vdwg.mxu0
    %v590 = vadd.f32 %v417, %v587
    %vm591 = vcmask 125952
    %592 = vst.msk [vmem:[#allocation8] sm:$0xf] %vm591, %v590
    // Predicated region
    $region18: #{tpu_custom_call.1} parent=1 // pred_check
      _
    $region19: #{tpu_custom_call.1} parent=1 // pred_check_branch
      %594 = sbr.rel (0) target = $region21
    $region20: #{tpu_custom_call.1} parent=1 // pred_region
      %s595 = sadd.s32 0, 0
      %s597 = ssub.s32 64, 64
      %598 = vsyncadd [#allocation4], %s597
      %s599 = smul.addr %s595, 64
      %s600 = scalar_lea.hbm %s2, %s599
      %s602 = sshll.u32 [#allocation5], 4
      %s603 = int_to_ptr.vmem [resolvable:$true] %s602
      %605 = dma.vmem_to_hbm [thread:$0]  %s603, 64, %s600, [#allocation4]
    $region21: #{tpu_custom_call.1} parent=1 // pred_fallthru
      _
    // Predicated region
    $region22: #{tpu_custom_call.1} parent=1 // pred_check
      _
    $region23: #{tpu_custom_call.1} parent=1 // pred_check_branch
      %607 = sbr.rel (0) target = $region25
    $region24: #{tpu_custom_call.1} parent=1 // pred_region
      %s608 = sadd.s32 0, 0
      %s610 = ssub.s32 64, 64
      %611 = vsyncadd [#allocation7], %s610
      %s612 = smul.addr %s608, 64
      %s613 = scalar_lea.hbm %s3, %s612
      %s615 = sshll.u32 [#allocation6], 4
      %s616 = int_to_ptr.vmem [resolvable:$true] %s615
      %618 = dma.vmem_to_hbm [thread:$0]  %s616, 64, %s613, [#allocation7]
    $region25: #{tpu_custom_call.1} parent=1 // pred_fallthru
      _
    // Predicated region
    $region26: #{tpu_custom_call.1} parent=1 // pred_check
      _
    $region27: #{tpu_custom_call.1} parent=1 // pred_check_branch
      %620 = sbr.rel (0) target = $region29
    $region28: #{tpu_custom_call.1} parent=1 // pred_region
      %s622 = ssub.s32 64, 64
      %623 = vsyncadd [#allocation7], %s622
      %s625 = sshll.u32 [#allocation8], 4
      %s626 = int_to_ptr.vmem [resolvable:$true] %s625
      %628 = dma.vmem_to_hbm [thread:$0]  %s626, 64, %s4, [#allocation7]
    $region29: #{tpu_custom_call.1} parent=1 // pred_fallthru
      _
    // Predicated region
    $region30: #{tpu_custom_call.1} parent=1 // pred_check
      _
    $region31: #{tpu_custom_call.1} parent=1 // pred_check_branch
      %630 = sbr.rel (0) target = $region33
    $region32: #{tpu_custom_call.1} parent=1 // pred_region
      %631 = dma.done [#allocation4], 64
    $region33: #{tpu_custom_call.1} parent=1 // pred_fallthru
      _
    // Predicated region
    $region34: #{tpu_custom_call.1} parent=1 // pred_check
      _
    $region35: #{tpu_custom_call.1} parent=1 // pred_check_branch
      %633 = sbr.rel (0) target = $region37
    $region36: #{tpu_custom_call.1} parent=1 // pred_region
      %634 = dma.done [#allocation7], 64
    $region37: #{tpu_custom_call.1} parent=1 // pred_fallthru
      _
    // Predicated region
    $region38: #{tpu_custom_call.1} parent=1 // pred_check
      _
    $region39: #{tpu_custom_call.1} parent=1 // pred_check_branch
      %636 = sbr.rel (0) target = $region41
    $region40: #{tpu_custom_call.1} parent=1 // pred_region
      %637 = dma.done [#allocation7], 64
    $region41: #{tpu_custom_call.1} parent=1 // pred_fallthru
      _
    %638 = vsyncpa [#allocation3], 1
    %639 = vsyncpa [#allocation4], 1
    %640 = vsyncpa [#allocation7], 1

</llo_original>
